<compile_context>
chip_gen: v7x
topology: tpu7x:2x2x1
jax: 0.10.0
libtpu: 0.0.40
codegen_flags: <defaults>
</compile_context>

<pallas_src>
import math

import jax
import jax.numpy as jnp
from jax.experimental import pallas as pl
from jax.experimental.pallas import tpu as pltpu


def _gaussian_logprob_kernel(c_ref, mean_ref, inv_std_ref, x_ref, out_ref):
    # c_ref:       (1,)      SMEM   C = -sum(log std) - 0.5*D*log(2*pi)
    # mean_ref:    (1, D)    VMEM   broadcast over the batch tile
    # inv_std_ref: (1, D)    VMEM   1 / std
    # x_ref:       (TB, D)   VMEM   batch tile (f32 or bf16)
    # out_ref:     (1, 1, TB) VMEM  lane-dense per-row log-prob
    x = x_ref[...].astype(jnp.float32)
    z = (x - mean_ref[...]) * inv_std_ref[...]             # VPU elementwise
    ssq = jnp.sum(z * z, axis=-1, keepdims=True)           # (TB, 1) lane reduction
    lp = -0.5 * ssq + c_ref[0]                             # (TB, 1)
    # Lane-dense store: present per-row scalars along the 128-wide lane axis
    # instead of a last-dim-1 (masked vst) output block; XLU has slack here.
    out_ref[...] = jnp.transpose(lp, (1, 0))[None, :, :]   # (1, 1, TB)


def _choose_tile_b(B, D, itemsize):
    """Largest batch tile whose double-buffered x slab fits a conservative VMEM budget."""
    # ~8 MiB for the double-buffered x tile: safely under the scoped-VMEM default
    # on every generation (v7x has only 64 MiB physical / 32 MiB scoped default).
    budget = 8 * 1024 * 1024
    rows = budget // max(1, 2 * D * itemsize)
    rows = int(max(128, min(1024, rows)))
    rows -= rows % 128          # multiple of 128: lane-dense output, bf16 sublane pack OK
    # TODO(synk): for very large D (where even a 128-row tile overflows VMEM) add a
    # second grid axis over D with an f32 accumulator scratch instead of shrinking
    # the batch tile (matters most on v7x's 64 MiB VMEM).
    if B > rows:
        return rows             # many tiles; Pallas masks the partial last tile
    if B >= 256:
        # Whole batch fits one tile: split into >=2 grid steps anyway so the
        # "parallel" axis can be sharded across v7x's two TensorCores.
        half = -(-(B // 2) // 128) * 128
        return min(half, rows)
    return B                    # tiny batch: one exact (full-array) tile


def gaussian_base_log_prob(x, mean, std, *, tile_b=None):
    """log_prob of Independent(Normal(mean, std), 1) at x: [B, D] -> [B] float32."""
    B, D = x.shape
    if tile_b is None:
        tile_b = _choose_tile_b(B, D, jnp.dtype(x.dtype).itemsize)
    num_tiles = pl.cdiv(B, tile_b)

    mean2 = jnp.asarray(mean, jnp.float32).reshape(1, D)
    std_f32 = jnp.asarray(std, jnp.float32)
    inv_std2 = (1.0 / std_f32).reshape(1, D)
    # Scalar log-normalizer, folded out of the per-element kernel work.
    c = (-jnp.sum(jnp.log(std_f32)) - 0.5 * D * math.log(2.0 * math.pi)).reshape(1)

    # TODO(synk): for D < 128 (like the demo's D=32), packing k=128//D rows per
    # lane-row would recover the idle lanes; skipped here to keep the kernel simple.
    out = pl.pallas_call(
        _gaussian_logprob_kernel,
        out_shape=jax.ShapeDtypeStruct((num_tiles, 1, tile_b), jnp.float32),
        grid_spec=pltpu.PrefetchScalarGridSpec(
            num_scalar_prefetch=0,
            grid=(num_tiles,),
            in_specs=[
                pl.BlockSpec(memory_space=pltpu.MemorySpace.SMEM),  # C (scalar)
                pl.BlockSpec((1, D), lambda i: (0, 0)),             # mean     (broadcast)
                pl.BlockSpec((1, D), lambda i: (0, 0)),             # 1/std    (broadcast)
                pl.BlockSpec((tile_b, D), lambda i: (i, 0)),        # x batch tile
            ],
            out_specs=pl.BlockSpec((1, 1, tile_b), lambda i: (i, 0, 0)),
        ),
        compiler_params=pltpu.CompilerParams(
            dimension_semantics=("parallel",)
        ),
    )(c, mean2, inv_std2, x)
    # (num_tiles, 1, tile_b) -> (B,); garbage lanes of the masked last tile are dropped.
    return out.reshape(-1)[:B]


class GaussianBase:
    """JAX mirror of the PyTorch GaussianBase module (non-trainable params)."""

    def __init__(self, D):
        self.D = D
        # Deterministic init, exactly as in the PyTorch __init__:
        self.mean = jnp.zeros((D,), dtype=jnp.float32)
        self.std = jnp.ones((D,), dtype=jnp.float32)

    def log_prob(self, x):
        return gaussian_base_log_prob(x, self.mean, self.std)

    def sample(self, key, sample_shape=()):
        # Glue (plain JAX): sampling = mean + std * eps.
        eps = jax.random.normal(key, sample_shape + (self.D,), dtype=jnp.float32)
        return self.mean + self.std * eps

    def forward(self):
        # TODO(synk): torch.distributions.Distribution object has no Pallas
        # equivalent; we expose log_prob/sample directly instead.
        return self


if __name__ == "__main__":
    D = 32
    B = 8

    key = jax.random.PRNGKey(0)
    x = jax.random.normal(key, (B, D), dtype=jnp.float32)

    prior = GaussianBase(D)
    lp = prior.log_prob(x)
    lp = jax.block_until_ready(lp)

    # Pure-JAX reference for Independent(Normal(mean, std), 1).log_prob semantics.
    ref = jnp.sum(
        -0.5 * ((x - prior.mean) / prior.std) ** 2
        - jnp.log(prior.std)
        - 0.5 * math.log(2.0 * math.pi),
        axis=-1,
    )
    assert lp.shape == (B,)
    assert jnp.allclose(lp, ref, atol=1e-5, rtol=1e-5)

    print("KERNEL_OK")
</pallas_src>

<mosaic_0001>
module attributes {stable_mosaic.version = 11 : i64} {
  func.func @_gaussian_logprob_kernel(%arg0: i32, %arg1: memref<1xf32, #tpu.memory_space<smem>>, %arg2: memref<1x32xf32, #tpu.memory_space<vmem>>, %arg3: memref<1x32xf32, #tpu.memory_space<vmem>>, %arg4: memref<8x32xf32, #tpu.memory_space<vmem>>, %arg5: memref<1x1x8xf32, #tpu.memory_space<vmem>>) attributes {dimension_semantics = [#tpu.dimension_semantics<parallel>], iteration_bounds = array<i64: 1>, scalar_prefetch = 0 : i64, scratch_operands = 0 : i64, tpu.core_type = #tpu.core_type<tc>, window_params = [{transform_indices = @transform_0, window_bounds = array<i64: 1>}, {pipeline_mode = #tpu.pipeline_mode<synchronous>, transform_indices = @transform_1, window_bounds = array<i64: 1, 32>}, {pipeline_mode = #tpu.pipeline_mode<synchronous>, transform_indices = @transform_2, window_bounds = array<i64: 1, 32>}, {transform_indices = @transform_3, window_bounds = array<i64: 8, 32>}, {transform_indices = @transform_4, window_bounds = array<i64: 1, 1, 8>}]} {
    %c0 = arith.constant 0 : index
    %c0_0 = arith.constant 0 : index
    %0 = vector.load %arg4[%c0, %c0_0] : memref<8x32xf32, #tpu.memory_space<vmem>>, vector<8x32xf32>
    %c0_1 = arith.constant 0 : index
    %c0_2 = arith.constant 0 : index
    %1 = vector.load %arg2[%c0_1, %c0_2] : memref<1x32xf32, #tpu.memory_space<vmem>>, vector<1x32xf32>
    %2 = vector.broadcast %1 : vector<1x32xf32> to vector<8x32xf32>
    %3 = arith.subf %0, %2 : vector<8x32xf32>
    %c0_3 = arith.constant 0 : index
    %c0_4 = arith.constant 0 : index
    %4 = vector.load %arg3[%c0_3, %c0_4] : memref<1x32xf32, #tpu.memory_space<vmem>>, vector<1x32xf32>
    %5 = vector.broadcast %4 : vector<1x32xf32> to vector<8x32xf32>
    %6 = arith.mulf %3, %5 : vector<8x32xf32>
    %7 = arith.mulf %6, %6 : vector<8x32xf32>
    %cst = arith.constant dense<0.000000e+00> : vector<8xf32>
    %8 = vector.multi_reduction <add>, %7, %cst [1] : vector<8x32xf32> to vector<8xf32>
    %9 = vector.shape_cast %8 : vector<8xf32> to vector<8x1xf32>
    %cst_5 = arith.constant -5.000000e-01 : f32
    %10 = vector.broadcast %cst_5 : f32 to vector<8x1xf32>
    %11 = arith.mulf %10, %9 : vector<8x1xf32>
    %c0_6 = arith.constant 0 : index
    %12 = memref.load %arg1[%c0_6] : memref<1xf32, #tpu.memory_space<smem>>
    %13 = vector.broadcast %12 : f32 to vector<8x1xf32>
    %14 = arith.addf %11, %13 : vector<8x1xf32>
    %15 = tpu.transpose %14, [1, 0] : vector<8x1xf32> -> vector<1x8xf32>
    %16 = vector.shape_cast %15 : vector<1x8xf32> to vector<1x1x8xf32>
    %c0_7 = arith.constant 0 : index
    %c0_8 = arith.constant 0 : index
    %c0_9 = arith.constant 0 : index
    %17 = vector.load %arg5[%c0_7, %c0_8, %c0_9] : memref<1x1x8xf32, #tpu.memory_space<vmem>>, vector<1x1x8xf32>
    tpu.vector_store %arg5[%c0_7, %c0_8, %c0_9], %16 {strides = array<i32>} : memref<1x1x8xf32, #tpu.memory_space<vmem>>, vector<1x1x8xf32>,
    return
  }
  func.func @transform_0(%arg0: i32) -> i32 {
    %c0_i32 = arith.constant 0 : i32
    %c0_i32_0 = arith.constant 0 : i32
    return %c0_i32 : i32
  }
  func.func @transform_1(%arg0: i32) -> (i32, i32) {
    %c0_i32 = arith.constant 0 : i32
    %c0_i32_0 = arith.constant 0 : i32
    %c0_i32_1 = arith.constant 0 : i32
    return %c0_i32, %c0_i32_0 : i32, i32
  }
  func.func @transform_2(%arg0: i32) -> (i32, i32) {
    %c0_i32 = arith.constant 0 : i32
    %c0_i32_0 = arith.constant 0 : i32
    %c0_i32_1 = arith.constant 0 : i32
    return %c0_i32, %c0_i32_0 : i32, i32
  }
  func.func @transform_3(%arg0: i32) -> (i32, i32) {
    %c0_i32 = arith.constant 0 : i32
    %c0_i32_0 = arith.constant 0 : i32
    return %arg0, %c0_i32 : i32, i32
  }
  func.func @transform_4(%arg0: i32) -> (i32, i32, i32) {
    %c0_i32 = arith.constant 0 : i32
    %c0_i32_0 = arith.constant 0 : i32
    %c0_i32_1 = arith.constant 0 : i32
    return %arg0, %c0_i32, %c0_i32_0 : i32, i32, i32
  }
}

</mosaic_0001>

<llo_original>
// kernel: tpu_custom_call.1
$region0: #{tpu_custom_call.1}
  #allocation0 [shape = 'u32[]', space=smem, size = 0x4, offset = 0x4, fixed_abs, tag = 'smem constant byte address 0x4 - core index']
  #allocation1 [shape = 'u32[144,128]{1,0:T(1,128)}', space=vmem, size = 0x12000, scoped, tag = 'internal scratch']
  #allocation2 [shape = 'f32[1]{0:T(128)S(6)}', space=smem, size = 0x200, scoped, tag = 'scoped memory for tpu_custom_call.1']
  %s0 = inlined_call_operand.<no memory space> [shape: f32[1], index: 0, kind: input, shape index: {}]
  %s1 = inlined_call_operand.vmem [shape: f32[1,32], index: 1, kind: input, shape index: {}]
  %s2 = inlined_call_operand.vmem [shape: f32[1,32], index: 2, kind: input, shape index: {}]
  %s3 = inlined_call_operand.vmem [shape: f32[8,32], index: 3, kind: input, shape index: {}]
  %s4 = inlined_call_operand.hbm [shape: f32[1,1,8], index: 4, kind: output, shape index: {}]
  %s5 = sld [smem:[#allocation0]]
  $region26: #{tpu_custom_call.1} parent=0
    _
  %s7 = ssub.s32 1, %s5
  %s8 = scalar_select 0, %s7, %s5
  %9 = sst [smem:[#allocation2]] %s0
  $region1: #{tpu_custom_call.1} parent=0
    #allocation3 [shape = 'u8[512]{0}', space=vmem, size = 0x400, scoped, tag = 'output window, operand 0, single buffered']
    #allocation4 [shape = 's32[1]{0}', space=sflag, size = 0x4, scoped, tag = 'scoped memory for tpu_custom_call.1']
    %10 = vsyncpa [#allocation4], 0
    // Predicated region
    $region2: #{tpu_custom_call.1} parent=1 // pred_check
      _
    $region3: #{tpu_custom_call.1} parent=1 // pred_check_branch
      %12 = sbr.rel (0) target = $region5
    $region4: #{tpu_custom_call.1} parent=1 // pred_region
      _
    $region5: #{tpu_custom_call.1} parent=1 // pred_fallthru
      _
    // Predicated region
    $region6: #{tpu_custom_call.1} parent=1 // pred_check
      _
    $region7: #{tpu_custom_call.1} parent=1 // pred_check_branch
      %14 = sbr.rel (0) target = $region9
    $region8: #{tpu_custom_call.1} parent=1 // pred_region
      _
    $region9: #{tpu_custom_call.1} parent=1 // pred_fallthru
      _
    // Predicated region
    $region10: #{tpu_custom_call.1} parent=1 // pred_check
      _
    $region11: #{tpu_custom_call.1} parent=1 // pred_check_branch
      %16 = sbr.rel (0) target = $region13
    $region12: #{tpu_custom_call.1} parent=1 // pred_region
      _
    $region13: #{tpu_custom_call.1} parent=1 // pred_fallthru
      _
    // Predicated region
    $region14: #{tpu_custom_call.1} parent=1 // pred_check
      _
    $region15: #{tpu_custom_call.1} parent=1 // pred_check_branch
      %18 = sbr.rel (0) target = $region17
    $region16: #{tpu_custom_call.1} parent=1 // pred_region
      _
    $region17: #{tpu_custom_call.1} parent=1 // pred_fallthru
      _
    %v19 = vld [vmem:[%s3] sm:$0xff]
    %v20 = vld [vmem:[%s1] sm:$0x1]
    %v22 = vlaneseq
    %v23 = vshrl.u32 %v22, 7
    %v24 = vsub.s32 0, %v23
    %v25 = vrot.slane %v20, %v24
    %v27 = vsub.f32 %v19, %v25
    %v28 = vld [vmem:[%s2] sm:$0x1]
    %v30 = vlaneseq
    %v31 = vshrl.u32 %v30, 7
    %v32 = vsub.s32 0, %v31
    %v33 = vrot.slane %v28, %v32
    %v35 = vmul.f32 %v27, %v33
    %v36 = vmul.f32 %v35, %v35
    %vm37 = vcmask 261120
    %v38 = vsel %vm37, %v36, 0.0
    %39 = vadd.xlane.f32.xlu0 %v38
    %v40 = vpop.xlane.xlu0 %39
    %v41 = vmul.f32 %v40, -0.5
    %s42 = sld [smem:[#allocation2]]
    %v43 = vstv %s42
    %v44 = vadd.f32 %v41, %v43
    %45 = vxpose.xlu0.b32.start [1/16] %v44, 128
    %46 = vxpose.xlu0.b32.cont [2/16] 0.0, 128
    %47 = vxpose.xlu0.b32.cont [3/16] 0.0, 128
    %48 = vxpose.xlu0.b32.cont [4/16] 0.0, 128
    %49 = vxpose.xlu0.b32.cont [5/16] 0.0, 128
    %50 = vxpose.xlu0.b32.cont [6/16] 0.0, 128
    %51 = vxpose.xlu0.b32.cont [7/16] 0.0, 128
    %52 = vxpose.xlu0.b32.cont [8/16] 0.0, 128
    %53 = vxpose.xlu0.b32.cont [9/16] 0.0, 128
    %54 = vxpose.xlu0.b32.cont [10/16] 0.0, 128
    %55 = vxpose.xlu0.b32.cont [11/16] 0.0, 128
    %56 = vxpose.xlu0.b32.cont [12/16] 0.0, 128
    %57 = vxpose.xlu0.b32.cont [13/16] 0.0, 128
    %58 = vxpose.xlu0.b32.cont [14/16] 0.0, 128
    %59 = vxpose.xlu0.b32.cont [15/16] 0.0, 128
    %60 = vxpose.xlu0.b32.end [16/16] 0.0, 128
    %v61 = vpop.trf.xlu0
    %v62 = vpop.trf.xlu0
    %v63 = vpop.trf.xlu0
    %v64 = vpop.trf.xlu0
    %v65 = vpop.trf.xlu0
    %v66 = vpop.trf.xlu0
    %v67 = vpop.trf.xlu0
    %v68 = vpop.trf.xlu0
    %v69 = vpop.trf.xlu0
    %v70 = vpop.trf.xlu0
    %v71 = vpop.trf.xlu0
    %v72 = vpop.trf.xlu0
    %v73 = vpop.trf.xlu0
    %v74 = vpop.trf.xlu0
    %v75 = vpop.trf.xlu0
    %v76 = vpop.trf.xlu0
    %vm77 = vcmask 57344
    %78 = vst.msk [vmem:[#allocation3] sm:$0x1] %vm77, %v61
    // Predicated region
    $region18: #{tpu_custom_call.1} parent=1 // pred_check
      _
    $region19: #{tpu_custom_call.1} parent=1 // pred_check_branch
      %80 = sbr.rel (0) target = $region21
    $region20: #{tpu_custom_call.1} parent=1 // pred_region
      %s82 = ssub.s32 16, 16
      %83 = vsyncadd [#allocation4], %s82
      %s85 = sshll.u32 [#allocation3], 4
      %s86 = int_to_ptr.vmem [resolvable:$true] %s85
      %88 = dma.vmem_to_hbm [thread:$0]  %s86, 16, %s4, [#allocation4]
    $region21: #{tpu_custom_call.1} parent=1 // pred_fallthru
      _
    // Predicated region
    $region22: #{tpu_custom_call.1} parent=1 // pred_check
      _
    $region23: #{tpu_custom_call.1} parent=1 // pred_check_branch
      %90 = sbr.rel (0) target = $region25
    $region24: #{tpu_custom_call.1} parent=1 // pred_region
      %91 = dma.done [#allocation4], 16
    $region25: #{tpu_custom_call.1} parent=1 // pred_fallthru
      _
    %92 = vsyncpa [#allocation4], 1

</llo_original>
